<compile_context>
chip_gen: v7x
topology: tpu7x:2x2x1
jax: 0.10.0
libtpu: 0.0.40
codegen_flags: <defaults>
</compile_context>

<pallas_src>
import functools
from collections import defaultdict
from typing import Dict, List

import numpy as np

import jax
import jax.numpy as jnp
from jax.experimental import pallas as pl
from jax.experimental.pallas import tpu as pltpu

MAX_INPUT_ID = 32                      # ManagedCollisionModule(max_input_id=32, ...)
MAX_OUTPUT_ID = 16                     # ManagedCollisionModule(max_output_id=16, ...)
WORDS_PER_TABLE = MAX_INPUT_ID // 8    # 8 nibbles per int32 word -> 4 words / table

LANE = 128
MAX_BLOCK_ROWS = 4096                  # (4096, 128) int32 = 2 MiB per buffer
VMEM_LIMIT_BYTES = 32 << 20            # explicit; well inside v5e/v6e/v7x budgets


def _round_up(x, m):
    return (x + m - 1) // m * m


def _pack_table(table) -> np.ndarray:
    """Pack a (32,) remap table of 4-bit values into (4,) int32 words."""
    tbl = np.asarray(jax.device_get(table)).astype(np.int64)
    assert tbl.shape == (MAX_INPUT_ID,), "table must have max_input_id entries"
    assert np.all((tbl >= 0) & (tbl < MAX_OUTPUT_ID)), (
        "remap table entries must lie in [0, max_output_id)")
    words = np.zeros((WORDS_PER_TABLE,), dtype=np.int64)
    for e in range(MAX_INPUT_ID):
        words[e // 8] |= (int(tbl[e]) & 0xF) << (4 * (e % 8))
    # reinterpret as two's-complement int32 (top nibble may set bit 31)
    return words.astype(np.uint32).view(np.int32)


def _mc_remap_kernel(meta_ref, ids_ref, out_ref, *, num_blocks, num_features):
    """Preprocess (mod 32) + packed-table remap for one per-feature row block.

    meta_ref : SMEM int32[(num_blocks + 5*F,)]
               [0:NB]            block -> feature index
               [NB:NB+F]         per-feature flag (1 = MC remap, 0 = passthrough)
               [NB+F:NB+5F]      per-feature packed remap tables (4 words each)
    ids_ref  : VMEM int32[(block_rows, 128)]  raw ids (one feature's rows)
    out_ref  : VMEM int32[(block_rows, 128)]  remapped ids
    """
    i = pl.program_id(0)
    f = meta_ref[i]                         # feature owning this block (scalar)
    flag = meta_ref[num_blocks + f]         # scalar SMEM read

    @pl.when(flag == 0)
    def _():
        # passthrough feature: straight copy, pure DMA bandwidth
        out_ref[...] = ids_ref[...]

    @pl.when(flag != 0)
    def _():
        ids = ids_ref[...]
        # preprocess: id mod 32 (power of two -> AND; matches floored modulo
        # for negative ids in two's complement)
        ids_m = ids & (MAX_INPUT_ID - 1)
        widx = ids_m >> 3                   # which packed word (8 nibbles / word)
        shift = (ids_m & 7) << 2            # nibble bit-offset within that word

        base = num_blocks + num_features + f * WORDS_PER_TABLE
        w0 = meta_ref[base + 0]
        w1 = meta_ref[base + 1]
        w2 = meta_ref[base + 2]
        w3 = meta_ref[base + 3]
        word = jnp.where(widx == 0, w0,
               jnp.where(widx == 1, w1,
               jnp.where(widx == 2, w2, w3)))

        # extract the 4-bit remapped id (mask fixes arithmetic-shift sign bits)
        out_ref[...] = (word >> shift) & (MAX_OUTPUT_ID - 1)


def mc_remap_padded(vals2d: jax.Array,
                    meta: jax.Array,
                    num_blocks: int,
                    num_features: int,
                    block_rows: int) -> jax.Array:
    """Remap the block-padded 2-D value stream in a single pallas_call."""
    n_rows = vals2d.shape[0]
    kernel = functools.partial(
        _mc_remap_kernel, num_blocks=num_blocks, num_features=num_features)
    return pl.pallas_call(
        kernel,
        out_shape=jax.ShapeDtypeStruct((n_rows, LANE), jnp.int32),
        grid_spec=pltpu.PrefetchScalarGridSpec(
            num_scalar_prefetch=1,              # merged metadata -> SMEM
            grid=(num_blocks,),
            in_specs=[pl.BlockSpec((block_rows, LANE), lambda i, meta: (i, 0))],
            out_specs=pl.BlockSpec((block_rows, LANE), lambda i, meta: (i, 0)),
        ),
        compiler_params=pltpu.CompilerParams(
            # embarrassingly parallel over blocks -> shard across v7x's 2 TCs
            dimension_semantics=("parallel",),
            vmem_limit_bytes=VMEM_LIMIT_BYTES,
        ),
    )(meta, vals2d)


class ManagedCollisionCollectionPallas:
    """JAX/Pallas port of torchrec ManagedCollisionCollection.forward."""

    def __init__(
        self,
        feature_to_mc: Dict[str, str],
        managed_collision_tables: Dict[str, jax.Array],
    ) -> None:
        self._features_to_mc = feature_to_mc
        self._mc_to_features: Dict[str, List[str]] = defaultdict(list)
        for feature_name, mc_name in feature_to_mc.items():
            self._mc_to_features[mc_name].append(feature_name)
        for mc_name in self._mc_to_features:
            if mc_name not in managed_collision_tables:
                raise ValueError(
                    f"{mc_name} is not present in managed_collision_modules")
        # bit-pack every table once at construction time (host-side numpy)
        self._packed_tables: Dict[str, np.ndarray] = {
            name: _pack_table(tbl)
            for name, tbl in managed_collision_tables.items()
        }

    def forward(self, kjt: Dict) -> Dict[str, Dict[str, jax.Array]]:
        """kjt: {'keys': [str], 'values': int[total], 'lengths': int32[F*B]}
        Returns dict feature -> {'values', 'lengths'} (JaggedTensor.to_dict())."""
        keys = kjt["keys"]
        values = kjt["values"]
        lengths = kjt["lengths"]
        num_features = len(keys)
        if num_features == 0:
            return {}
        batch = lengths.shape[0] // num_features

        # TODO(synk): int64 KJT values are truncated to int32 for passthrough
        # features (MC features unaffected; only the low 5 bits matter there).
        vals = values.astype(jnp.int32)

        # single host sync for the jagged structure (needed anyway to split the
        # output into per-feature variable-length arrays)
        lengths_np = np.asarray(jax.device_get(lengths)).reshape(num_features, batch)
        length_per_key = lengths_np.sum(axis=1).astype(np.int64)
        off = np.zeros((num_features + 1,), dtype=np.int64)
        off[1:] = np.cumsum(length_per_key)
        total = int(off[-1])
        assert total < 2**31, "value stream too long for int32 indexing"

        if total == 0:
            return {
                key: {
                    "values": vals[0:0],
                    "lengths": lengths[f * batch: (f + 1) * batch],
                }
                for f, key in enumerate(keys)
            }

        # ---- block-size selection (per perf review) -------------------------
        rows_per_key = -(-length_per_key // LANE)          # ceil div, per feature
        max_rows = int(rows_per_key.max())
        block_rows = int(min(MAX_BLOCK_ROWS, max(8, _round_up(max_rows, 8))))
        if num_features == 1 and 16 <= max_rows <= MAX_BLOCK_ROWS:
            # ensure >= 2 blocks so v7x's two TensorCores both get work
            block_rows = int(max(8, _round_up(-(-max_rows // 2), 8)))

        padded_rows = np.where(rows_per_key > 0,
                               _round_up(rows_per_key, block_rows), 0)
        prow_off = np.zeros((num_features + 1,), dtype=np.int64)
        prow_off[1:] = np.cumsum(padded_rows)
        total_rows = int(prow_off[-1])
        blocks_per_key = (padded_rows // block_rows).astype(np.int64)
        num_blocks = int(blocks_per_key.sum())

        # ---- build per-feature block-padded 2-D layout -----------------------
        segs = []
        for f in range(num_features):
            n_f = int(length_per_key[f])
            if n_f == 0:
                continue
            seg = vals[int(off[f]): int(off[f + 1])]
            pad_to = int(padded_rows[f]) * LANE
            if pad_to > n_f:
                seg = jnp.pad(seg, (0, pad_to - n_f))
            segs.append(seg)
        vals2d = jnp.concatenate(segs).reshape(total_rows, LANE)

        # ---- merged SMEM metadata: block->feature, flags, packed tables ------
        blk_feat = np.repeat(np.arange(num_features, dtype=np.int32),
                             blocks_per_key)
        flags = np.array(
            [1 if k in self._features_to_mc else 0 for k in keys], np.int32)
        packed = np.concatenate([
            self._packed_tables[self._features_to_mc[k]]
            if k in self._features_to_mc
            else np.zeros((WORDS_PER_TABLE,), np.int32)
            for k in keys
        ]).astype(np.int32)
        meta = jnp.asarray(
            np.concatenate([blk_feat, flags, packed]).astype(np.int32))

        # ---- single fused pallas_call over all features ----------------------
        out_flat = mc_remap_padded(
            vals2d, meta, num_blocks, num_features, block_rows).reshape(-1)

        out: Dict[str, Dict[str, jax.Array]] = {}
        for f, key in enumerate(keys):
            start = int(prow_off[f]) * LANE
            n_f = int(length_per_key[f])
            out[key] = {
                "values": out_flat[start: start + n_f],
                "lengths": lengths[f * batch: (f + 1) * batch],
            }
        return out


def _reference_remap(values, table):
    ids = jnp.remainder(values.astype(jnp.int32), MAX_INPUT_ID)
    return table[ids]


if __name__ == "__main__":
    key = jax.random.PRNGKey(0)
    k_tbl1, k_tbl2, k_vals = jax.random.split(key, 3)

    # Deterministic "managed collision" remap tables: id in [0,32) -> [0,16)
    table_t1 = jax.random.randint(k_tbl1, (MAX_INPUT_ID,), 0, MAX_OUTPUT_ID, jnp.int32)
    table_t2 = jax.random.randint(k_tbl2, (MAX_INPUT_ID,), 0, MAX_OUTPUT_ID, jnp.int32)

    # f1 -> t1, f2 -> t2, f3 has no MC module (passthrough)
    feature_to_mc = {"f1": "t1", "f2": "t2"}
    mcc = ManagedCollisionCollectionPallas(
        feature_to_mc, {"t1": table_t1, "t2": table_t2}
    )

    # KeyedJaggedTensor: 3 features, batch=2, jagged lengths, [F x B x L] order.
    keys = ["f1", "f2", "f3"]
    batch = 2
    lengths = jnp.array([3, 2, 1, 4, 2, 3], dtype=jnp.int32)
    total = int(np.asarray(lengths).sum())
    # raw ids exceed max_input_id on purpose to exercise preprocess (modulo)
    values = jax.random.randint(k_vals, (total,), 0, 64, jnp.int32)

    kjt = {"keys": keys, "values": values, "lengths": lengths}

    result = mcc.forward(kjt)
    for k in keys:
        jax.block_until_ready(result[k]["values"])

    # correctness check against pure-JAX reference
    lpk = np.asarray(lengths).reshape(len(keys), batch).sum(axis=1)
    off = np.concatenate([[0], np.cumsum(lpk)])
    ref_f1 = _reference_remap(values[off[0]:off[1]], table_t1)
    ref_f2 = _reference_remap(values[off[1]:off[2]], table_t2)
    ref_f3 = values[off[2]:off[3]]                      # passthrough
    assert jnp.array_equal(result["f1"]["values"], ref_f1)
    assert jnp.array_equal(result["f2"]["values"], ref_f2)
    assert jnp.array_equal(result["f3"]["values"], ref_f3)
    assert jnp.array_equal(result["f1"]["lengths"], lengths[0:2])
    assert jnp.array_equal(result["f2"]["lengths"], lengths[2:4])
    assert jnp.array_equal(result["f3"]["lengths"], lengths[4:6])

    print("KERNEL_OK")
</pallas_src>

<mosaic_0001>
module attributes {stable_mosaic.version = 11 : i64} {
  func.func @_mc_remap_kernel(%arg0: i32, %arg1: memref<18xi32, #tpu.memory_space<smem>>, %arg2: memref<8x128xi32, #tpu.memory_space<vmem>>, %arg3: memref<8x128xi32, #tpu.memory_space<vmem>>) attributes {dimension_semantics = [#tpu.dimension_semantics<parallel>], iteration_bounds = array<i64: 3>, scalar_prefetch = 1 : i64, scratch_operands = 0 : i64, tpu.core_type = #tpu.core_type<tc>, window_params = [{transform_indices = @transform_0, window_bounds = array<i64: 8, 128>}, {transform_indices = @transform_1, window_bounds = array<i64: 8, 128>}]} {
    %0 = arith.index_cast %arg0 : i32 to index
    %1 = memref.load %arg1[%0] : memref<18xi32, #tpu.memory_space<smem>>
    %c3_i32 = arith.constant 3 : i32
    %2 = arith.addi %c3_i32, %1 : i32
    %3 = arith.index_cast %2 : i32 to index
    %4 = memref.load %arg1[%3] : memref<18xi32, #tpu.memory_space<smem>>
    %c0_i32 = arith.constant 0 : i32
    %5 = arith.cmpi eq, %4, %c0_i32 : i32
    %6 = arith.extui %5 : i1 to i32
    %c0_i32_0 = arith.constant 0 : i32
    %7 = arith.cmpi ne, %6, %c0_i32_0 : i32
    scf.if %7 {
      %c0 = arith.constant 0 : index
      %c0_3 = arith.constant 0 : index
      %11 = vector.load %arg2[%c0, %c0_3] : memref<8x128xi32, #tpu.memory_space<vmem>>, vector<8x128xi32>
      %c0_4 = arith.constant 0 : index
      %c0_5 = arith.constant 0 : index
      %12 = vector.load %arg3[%c0_4, %c0_5] : memref<8x128xi32, #tpu.memory_space<vmem>>, vector<8x128xi32>
      tpu.vector_store %arg3[%c0_4, %c0_5], %11 {strides = array<i32>} : memref<8x128xi32, #tpu.memory_space<vmem>>, vector<8x128xi32>,
    } else {
    }
    %c0_i32_1 = arith.constant 0 : i32
    %8 = arith.cmpi ne, %4, %c0_i32_1 : i32
    %9 = arith.extui %8 : i1 to i32
    %c0_i32_2 = arith.constant 0 : i32
    %10 = arith.cmpi ne, %9, %c0_i32_2 : i32
    scf.if %10 {
      %c0 = arith.constant 0 : index
      %c0_3 = arith.constant 0 : index
      %11 = vector.load %arg2[%c0, %c0_3] : memref<8x128xi32, #tpu.memory_space<vmem>>, vector<8x128xi32>
      %c31_i32 = arith.constant 31 : i32
      %12 = vector.broadcast %c31_i32 : i32 to vector<8x128xi32>
      %13 = arith.andi %11, %12 : vector<8x128xi32>
      %c3_i32_4 = arith.constant 3 : i32
      %14 = vector.broadcast %c3_i32_4 : i32 to vector<8x128xi32>
      %15 = arith.shrsi %13, %14 : vector<8x128xi32>
      %c7_i32 = arith.constant 7 : i32
      %16 = vector.broadcast %c7_i32 : i32 to vector<8x128xi32>
      %17 = arith.andi %13, %16 : vector<8x128xi32>
      %c2_i32 = arith.constant 2 : i32
      %18 = vector.broadcast %c2_i32 : i32 to vector<8x128xi32>
      %19 = arith.shli %17, %18 : vector<8x128xi32>
      %c4_i32 = arith.constant 4 : i32
      %20 = arith.muli %1, %c4_i32 : i32
      %c6_i32 = arith.constant 6 : i32
      %21 = arith.addi %c6_i32, %20 : i32
      %c0_i32_5 = arith.constant 0 : i32
      %22 = arith.addi %21, %c0_i32_5 : i32
      %23 = arith.index_cast %22 : i32 to index
      %24 = memref.load %arg1[%23] : memref<18xi32, #tpu.memory_space<smem>>
      %c1_i32 = arith.constant 1 : i32
      %25 = arith.addi %21, %c1_i32 : i32
      %26 = arith.index_cast %25 : i32 to index
      %27 = memref.load %arg1[%26] : memref<18xi32, #tpu.memory_space<smem>>
      %c2_i32_6 = arith.constant 2 : i32
      %28 = arith.addi %21, %c2_i32_6 : i32
      %29 = arith.index_cast %28 : i32 to index
      %30 = memref.load %arg1[%29] : memref<18xi32, #tpu.memory_space<smem>>
      %c3_i32_7 = arith.constant 3 : i32
      %31 = arith.addi %21, %c3_i32_7 : i32
      %32 = arith.index_cast %31 : i32 to index
      %33 = memref.load %arg1[%32] : memref<18xi32, #tpu.memory_space<smem>>
      %c0_i32_8 = arith.constant 0 : i32
      %34 = vector.broadcast %c0_i32_8 : i32 to vector<8x128xi32>
      %35 = arith.cmpi eq, %15, %34 : vector<8x128xi32>
      %c1_i32_9 = arith.constant 1 : i32
      %36 = vector.broadcast %c1_i32_9 : i32 to vector<8x128xi32>
      %37 = arith.cmpi eq, %15, %36 : vector<8x128xi32>
      %c2_i32_10 = arith.constant 2 : i32
      %38 = vector.broadcast %c2_i32_10 : i32 to vector<8x128xi32>
      %39 = arith.cmpi eq, %15, %38 : vector<8x128xi32>
      %40 = vector.broadcast %30 : i32 to vector<8x128xi32>
      %41 = vector.broadcast %33 : i32 to vector<8x128xi32>
      %42 = arith.select %39, %40, %41 : vector<8x128xi1>, vector<8x128xi32>
      %43 = vector.broadcast %27 : i32 to vector<8x128xi32>
      %44 = arith.select %37, %43, %42 : vector<8x128xi1>, vector<8x128xi32>
      %45 = vector.broadcast %24 : i32 to vector<8x128xi32>
      %46 = arith.select %35, %45, %44 : vector<8x128xi1>, vector<8x128xi32>
      %47 = arith.shrsi %46, %19 : vector<8x128xi32>
      %c15_i32 = arith.constant 15 : i32
      %48 = vector.broadcast %c15_i32 : i32 to vector<8x128xi32>
      %49 = arith.andi %47, %48 : vector<8x128xi32>
      %c0_11 = arith.constant 0 : index
      %c0_12 = arith.constant 0 : index
      %50 = vector.load %arg3[%c0_11, %c0_12] : memref<8x128xi32, #tpu.memory_space<vmem>>, vector<8x128xi32>
      tpu.vector_store %arg3[%c0_11, %c0_12], %49 {strides = array<i32>} : memref<8x128xi32, #tpu.memory_space<vmem>>, vector<8x128xi32>,
    } else {
    }
    return
  }
  func.func @transform_0(%arg0: i32, %arg1: memref<18xi32, #tpu.memory_space<smem>>) -> (i32, i32) {
    %c0_i32 = arith.constant 0 : i32
    %c0_i32_0 = arith.constant 0 : i32
    return %arg0, %c0_i32 : i32, i32
  }
  func.func @transform_1(%arg0: i32, %arg1: memref<18xi32, #tpu.memory_space<smem>>) -> (i32, i32) {
    %c0_i32 = arith.constant 0 : i32
    %c0_i32_0 = arith.constant 0 : i32
    return %arg0, %c0_i32 : i32, i32
  }
}

</mosaic_0001>

<llo_original>
// kernel: tpu_custom_call.1
$region0: #{tpu_custom_call.1}
  #allocation0 [shape = 'u32[]', space=smem, size = 0x4, offset = 0x4, fixed_abs, tag = 'smem constant byte address 0x4 - core index']
  #allocation1 [shape = 'u32[144,128]{1,0:T(1,128)}', space=vmem, size = 0x12000, scoped, tag = 'internal scratch']
  #allocation2 [shape = 's32[1]{0}', space=sflag, size = 0x4, scoped, tag = 'scoped memory for tpu_custom_call.1']
  #allocation3 [shape = 'u8[512]{0}', space=smem, size = 0x200, scoped, tag = 'prefetched SMEM operand 0']
  %s0 = inlined_call_operand.hbm [shape: s32[18], index: 0, kind: input, shape index: {}]
  %s1 = inlined_call_operand.hbm [shape: s32[24,128], index: 1, kind: input, shape index: {}]
  %s2 = inlined_call_operand.hbm [shape: s32[24,128], index: 2, kind: output, shape index: {}]
  %s3 = sld [smem:[#allocation0]]
  $region49: #{tpu_custom_call.1} parent=0
    _
  %s5 = ssub.s32 1, %s3
  %s6 = scalar_select 0, %s5, %s3
  %8 = dma.hbm_to_smem %s0, 16, [#allocation3], [#allocation2]
  %9 = dma.done [#allocation2], 16
  %10 = sfence
  $region1: #{tpu_custom_call.1} parent=0
    #allocation4 [shape = 'u8[8192]{0}', space=vmem, size = 0x2000, scoped, tag = 'input window, operand 1']
    #allocation5 [shape = 's32[2]{0}', space=sflag, size = 0x8, scoped, tag = 'scoped memory for tpu_custom_call.1']
    #allocation6 [shape = 's32[2]{0}', space=sflag, size = 0x8, scoped, tag = 'scoped memory for tpu_custom_call.1']
    #allocation7 [shape = 'u8[8192]{0}', space=vmem, size = 0x2000, scoped, tag = 'output window, operand 0']
    %11 = vsyncpa [#allocation5], 0
    %s12 = scalar_lea.sflag [#allocation5], 1
    %13 = vsyncpa %s12, 0
    %14 = vsyncpa [#allocation6], 0
    %s15 = scalar_lea.sflag [#allocation6], 1
    %16 = vsyncpa %s15, 0
    loop: start=0, step=1, limit=5
    $region2: #{tpu_custom_call.1} parent=1 // loop_pre_header
      _
    $region3: #{tpu_custom_call.1} parent=1 // loop_header
      %s18 = sphi 0, %s22
      %p19 = scmp.ge.s32.totalorder %s18, 5
      %s28 = sphi 0, %s30
      %s31 = sphi 0, %s28
      %s32 = sphi 0, %s31
      %s48 = sphi 0, %s32
      %s54 = sphi 0, %s56
      %s57 = sphi 0, %s54
      %s58 = sphi 0, %s57
      %s74 = sphi 0, %s58
    $region4: #{tpu_custom_call.1} parent=1 // loop_header_branch
      %21 = sbr.rel (%p19) target = $region8
    $region5: #{tpu_custom_call.1} parent=1 // loop_body
      %s23 = ssub.s32 %s18, 1
      %s24 = ssub.s32 %s18, 2
      %s25 = sadd.s32 %s18, 1
      %s26 = ssub.s32 %s18, %s25
      %p27 = scmp.eq.s32.totalorder %s26, 0
      %s29 = sadd.s32 %s28, 1
      %s30 = scalar_select %p27, %s28, %s29
      %p33 = pneg %p27
      %p34 = scmp.eq.s32.totalorder %s18, 2
      %p35 = por %p33, %p34
      %p36 = scmp.ne.s32.totalorder %s28, %s31
      %p37 = scmp.eq.s32.totalorder %s18, 0
      %p38 = por %p36, %p37
      %p39 = scmp.ne.s32.totalorder %s28, %s31
      %p40 = scmp.eq.s32.totalorder %s23, 2
      %p41 = por %p39, %p40
      %p42 = scmp.ne.s32.totalorder %s31, %s32
      %p43 = scmp.eq.s32.totalorder %s23, 0
      %p44 = por %p42, %p43
      %p45 = scmp.ne.s32.totalorder %s31, %s32
      %p46 = scmp.eq.s32.totalorder %s24, 2
      %p47 = por %p45, %p46
      %p49 = scmp.ne.s32.totalorder %s32, %s48
      %p50 = scmp.eq.s32.totalorder %s24, 0
      %p51 = por %p49, %p50
      %s52 = ssub.s32 %s18, %s25
      %p53 = scmp.eq.s32.totalorder %s52, 0
      %s55 = sadd.s32 %s54, 1
      %s56 = scalar_select %p53, %s54, %s55
      %p59 = pneg %p53
      %p60 = scmp.eq.s32.totalorder %s18, 2
      %p61 = por %p59, %p60
      %p62 = scmp.ne.s32.totalorder %s54, %s57
      %p63 = scmp.eq.s32.totalorder %s18, 0
      %p64 = por %p62, %p63
      %p65 = scmp.ne.s32.totalorder %s54, %s57
      %p66 = scmp.eq.s32.totalorder %s23, 2
      %p67 = por %p65, %p66
      %p68 = scmp.ne.s32.totalorder %s57, %s58
      %p69 = scmp.eq.s32.totalorder %s23, 0
      %p70 = por %p68, %p69
      %p71 = scmp.ne.s32.totalorder %s57, %s58
      %p72 = scmp.eq.s32.totalorder %s24, 2
      %p73 = por %p71, %p72
      %p75 = scmp.ne.s32.totalorder %s58, %s74
      %p76 = scmp.eq.s32.totalorder %s24, 0
      %p77 = por %p75, %p76
      %p78 = scmp.le.s32.totalorder 1, %s18
      %p79 = scmp.lt.s32.totalorder %s18, 4
      %p80 = pnand %p78, %p79
      %p81 = pneg %p80
      // Predicated region
      $region9: #{tpu_custom_call.1} parent=5 // pred_check
        _
      $region10: #{tpu_custom_call.1} parent=5 // pred_check_branch
        %83 = sbr.rel (%p80) target = $region12
      $region11: #{tpu_custom_call.1} parent=5 // pred_region
        %s84 = ssub.s32 %s18, 1
      $region12: #{tpu_custom_call.1} parent=5 // pred_fallthru
        _
      %p85 = scmp.lt.s32.totalorder %s18, 3
      // Predicated region
      $region13: #{tpu_custom_call.1} parent=5 // pred_check
        %p86 = pneg %p85
      $region14: #{tpu_custom_call.1} parent=5 // pred_check_branch
        %88 = sbr.rel (%p86) target = $region16
      $region15: #{tpu_custom_call.1} parent=5 // pred_region
        // Predicated region
        $region17: #{tpu_custom_call.1} parent=15 // pred_check
          %p89 = pneg %p38
        $region18: #{tpu_custom_call.1} parent=15 // pred_check_branch
          %91 = sbr.rel (%p89) target = $region20
        $region19: #{tpu_custom_call.1} parent=15 // pred_region
          %s92 = sand.u32 %s28, 1
          %s93 = scalar_lea.sflag [#allocation5], %s92
          %s94 = sand.u32 %s28, 1
          %s95 = smul.addr %s94, 8
          %s96 = scalar_lea.vmem [#allocation4], %s95
          %s98 = ssub.s32 128, 128
          %99 = vsyncadd %s93, %s98
          %s100 = smul.addr %s18, 128
          %s101 = scalar_lea.hbm %s1, %s100
          %s103 = sshll.u32 %s96, 4
          %s104 = int_to_ptr.vmem [resolvable:$true] %s103
          %106 = dma.hbm_to_vmem [thread:$0]  %s101, 128, %s104, %s93
        $region20: #{tpu_custom_call.1} parent=15 // pred_fallthru
          _
      $region16: #{tpu_custom_call.1} parent=5 // pred_fallthru
        _
      %p107 = scmp.le.s32.totalorder 1, %s18
      %p108 = scmp.lt.s32.totalorder %s18, 4
      %p109 = pnand %p107, %p108
      %p110 = pneg %p109
      // Predicated region
      $region21: #{tpu_custom_call.1} parent=5 // pred_check
        _
      $region22: #{tpu_custom_call.1} parent=5 // pred_check_branch
        %112 = sbr.rel (%p109) target = $region24
      $region23: #{tpu_custom_call.1} parent=5 // pred_region
        %s113 = ssub.s32 %s18, 1
        %s114 = sand.u32 %s31, 1
        %s115 = scalar_lea.sflag [#allocation5], %s114
        %s116 = sand.u32 %s31, 1
        %s117 = smul.addr %s116, 8
        %s118 = scalar_lea.vmem [#allocation4], %s117
        // Predicated region
        $region25: #{tpu_custom_call.1} parent=23 // pred_check
          %p119 = pneg %p44
        $region26: #{tpu_custom_call.1} parent=23 // pred_check_branch
          %121 = sbr.rel (%p119) target = $region28
        $region27: #{tpu_custom_call.1} parent=23 // pred_region
          %122 = dma.done %s115, 128
        $region28: #{tpu_custom_call.1} parent=23 // pred_fallthru
          _
        %s123 = sand.u32 %s31, 1
        %s124 = scalar_lea.sflag [#allocation5], %s123
        %s125 = sand.u32 %s31, 1
        %s126 = smul.addr %s125, 8
        %s127 = scalar_lea.vmem [#allocation4], %s126
        %p128 = pneg %p44
        %p129 = pneg %p41
        %p130 = pneg %p70
        %p131 = pneg %p67
        %s132 = sand.u32 %s57, 1
        %s133 = scalar_lea.sflag [#allocation6], %s132
        %s134 = sand.u32 %s57, 1
        %s135 = smul.addr %s134, 8
        %s136 = scalar_lea.vmem [#allocation7], %s135
        %s137 = sld [smem:[#allocation3 + %s23]]
        %s138 = sadd.s32 %s137, 3
        %s139 = sld [smem:[#allocation3 + %s138]]
        %p140 = scmp.eq.s32.totalorder %s139, 0
        // Predicated region
        $region29: #{tpu_custom_call.1} parent=23 // pred_check
          %p141 = pneg %p140
        $region30: #{tpu_custom_call.1} parent=23 // pred_check_branch
          %143 = sbr.rel (%p141) target = $region32
        $region31: #{tpu_custom_call.1} parent=23 // pred_region
          %v144 = vld [vmem:[%s118] sm:$0xff]
          %145 = vst [vmem:[%s136] sm:$0xff] %v144
        $region32: #{tpu_custom_call.1} parent=23 // pred_fallthru
          _
        %p146 = scmp.ne.s32.totalorder %s139, 0
        // Predicated region
        $region33: #{tpu_custom_call.1} parent=23 // pred_check
          %p147 = pneg %p146
        $region34: #{tpu_custom_call.1} parent=23 // pred_check_branch
          %149 = sbr.rel (%p147) target = $region36
        $region35: #{tpu_custom_call.1} parent=23 // pred_region
          %v150 = vld [vmem:[%s118] sm:$0xff]
          %v151 = vand.u32 %v150, 31
          %v152 = vshra.s32 %v151, 3
          %v153 = vand.u32 %v151, 7
          %v154 = vshll.u32 %v153, 2
          %s155 = smul.u32 %s137, 4
          %s156 = sadd.s32 %s155, 6
          %s157 = sld [smem:[#allocation3 + %s156]]
          %s158 = sadd.s32 %s155, 7
          %s159 = sld [smem:[#allocation3 + %s158]]
          %s160 = sadd.s32 %s155, 8
          %s161 = sld [smem:[#allocation3 + %s160]]
          %s162 = sadd.s32 %s155, 9
          %s163 = sld [smem:[#allocation3 + %s162]]
          %vm164 = vcmp.eq.s32.totalorder %v152, 0
          %vm165 = vcmp.eq.s32.totalorder %v152, 1
          %vm166 = vcmp.eq.s32.totalorder %v152, 2
          %v167 = vstv %s161
          %v168 = vstv %s163
          %v169 = vsel %vm166, %v167, %v168
          %v170 = vstv %s159
          %v171 = vsel %vm165, %v170, %v169
          %v172 = vstv %s157
          %v173 = vsel %vm164, %v172, %v171
          %v174 = vshra.s32 %v173, %v154
          %v175 = vand.u32 %v174, 15
          %176 = vst [vmem:[%s136] sm:$0xff] %v175
        $region36: #{tpu_custom_call.1} parent=23 // pred_fallthru
          _
        %s177 = sand.u32 %s57, 1
        %s178 = scalar_lea.sflag [#allocation6], %s177
        %s179 = sand.u32 %s57, 1
        %s180 = smul.addr %s179, 8
        %s181 = scalar_lea.vmem [#allocation7], %s180
        // Predicated region
        $region37: #{tpu_custom_call.1} parent=23 // pred_check
          %p182 = pneg %p67
        $region38: #{tpu_custom_call.1} parent=23 // pred_check_branch
          %184 = sbr.rel (%p182) target = $region40
        $region39: #{tpu_custom_call.1} parent=23 // pred_region
          %s186 = ssub.s32 128, 128
          %187 = vsyncadd %s178, %s186
          %s188 = smul.addr %s23, 128
          %s189 = scalar_lea.hbm %s2, %s188
          %s191 = sshll.u32 %s181, 4
          %s192 = int_to_ptr.vmem [resolvable:$true] %s191
          %194 = dma.vmem_to_hbm [thread:$0]  %s192, 128, %s189, %s178
        $region40: #{tpu_custom_call.1} parent=23 // pred_fallthru
          _
      $region24: #{tpu_custom_call.1} parent=5 // pred_fallthru
        _
      %p195 = scmp.le.s32.totalorder 2, %s18
      // Predicated region
      $region41: #{tpu_custom_call.1} parent=5 // pred_check
        %p196 = pneg %p195
      $region42: #{tpu_custom_call.1} parent=5 // pred_check_branch
        %198 = sbr.rel (%p196) target = $region44
      $region43: #{tpu_custom_call.1} parent=5 // pred_region
        %s199 = ssub.s32 %s18, 2
        // Predicated region
        $region45: #{tpu_custom_call.1} parent=43 // pred_check
          %p200 = pneg %p73
        $region46: #{tpu_custom_call.1} parent=43 // pred_check_branch
          %202 = sbr.rel (%p200) target = $region48
        $region47: #{tpu_custom_call.1} parent=43 // pred_region
          %s203 = sand.u32 %s58, 1
          %s204 = scalar_lea.sflag [#allocation6], %s203
          %s205 = sand.u32 %s58, 1
          %s206 = smul.addr %s205, 8
          %s207 = scalar_lea.vmem [#allocation7], %s206
          %208 = dma.done %s204, 128
        $region48: #{tpu_custom_call.1} parent=43 // pred_fallthru
          _
      $region44: #{tpu_custom_call.1} parent=5 // pred_fallthru
        _
    $region6: #{tpu_custom_call.1} parent=1 // loop_footer
      %s22 = sadd.s32 1, %s18
    $region7: #{tpu_custom_call.1} parent=1 // loop_footer_branch
      %17 = sbr.rel target = $region3
    $region8: #{tpu_custom_call.1} parent=1 // loop_exit
      _
    %209 = vsyncpa [#allocation5], 1
    %s210 = scalar_lea.sflag [#allocation5], 1
    %211 = vsyncpa %s210, 1
    %212 = vsyncpa [#allocation6], 1
    %s213 = scalar_lea.sflag [#allocation6], 1
    %214 = vsyncpa %s213, 1

</llo_original>
